<compile_context>
chip_gen: v5e
topology: v5e:2x2
jax: 0.10.0
libtpu: 0.0.40
codegen_flags: <defaults>
</compile_context>

<pallas_src>
import jax
import jax.numpy as jnp
from jax import lax
from jax.experimental import pallas as pl
from jax.experimental.pallas import tpu as pltpu


def _round_up(x, m):
    return ((x + m - 1) // m) * m


def _action_mask_kernel(obs_ref, mask_ref,
                        w1_ref, b1_ref, w2_ref, b2_ref, w3_ref, b3_ref,
                        out_ref):
    # fc1 + relu (f32 MXU matmul; compute is negligible vs HBM streaming)
    h1 = jnp.dot(obs_ref[...], w1_ref[...], preferred_element_type=jnp.float32)
    h1 = jnp.maximum(h1 + b1_ref[...], 0.0)

    # fc2 + relu
    h2 = jnp.dot(h1, w2_ref[...], preferred_element_type=jnp.float32)
    h2 = jnp.maximum(h2 + b2_ref[...], 0.0)

    # logits layer
    logits = jnp.dot(h2, w3_ref[...], preferred_element_type=jnp.float32) + b3_ref[...]

    # Action masking: rows whose mask sums to ~0 get action 0 forced valid.
    mask = mask_ref[...]                                     # f32 [tb, A]
    sum_mask = jnp.sum(mask, axis=1, keepdims=True)          # [tb, 1]
    zero_rows = sum_mask < 1e-8
    col0 = lax.broadcasted_iota(jnp.int32, mask.shape, 1) == 0
    mask = jnp.where(jnp.logical_and(zero_rows, col0), 1.0, mask)

    # Additive form preserved for exact semantic fidelity (non-binary masks).
    out_ref[...] = logits + (1.0 - mask) * (-1e20)


def action_mask_forward(obs, mask, params, *, block_b=1024):
    """obs: [B, OBS] f32, mask: [B, A] f32, params: pre-transposed [in, out] weights."""
    obs = jnp.asarray(obs, jnp.float32)
    mask = jnp.asarray(mask, jnp.float32)
    if obs.ndim == 1:
        obs = obs[None, :]
    if mask.ndim == 1:
        mask = mask[None, :]

    B, obs_size = obs.shape
    A = mask.shape[1]
    hid = params["w1"].shape[1]

    # Batch tiling: single full-batch tile for small B (no padding at all);
    # otherwise tile by block_b (multiple of 8) and pad the batch so the grid
    # divides evenly. Padded rows compute on zeros and are sliced off.
    if B <= block_b:
        tb, b_pad = B, B
    else:
        tb = _round_up(block_b, 8)
        b_pad = _round_up(B, tb)
        if b_pad != B:
            obs = jnp.pad(obs, ((0, b_pad - B), (0, 0)))
            mask = jnp.pad(mask, ((0, b_pad - B), (0, 0)))
    grid = (b_pad // tb,)

    flops = 2 * b_pad * (obs_size * hid + hid * hid + hid * A)
    bytes_accessed = 4 * (b_pad * obs_size + b_pad * A + b_pad * A
                          + obs_size * hid + hid * hid + hid * A
                          + 2 * hid + A)

    batched = lambda i: (i, 0)      # per-grid-step tiles (double-buffered)
    resident = lambda i: (0, 0)     # constant block index -> stays in VMEM

    out = pl.pallas_call(
        _action_mask_kernel,
        out_shape=jax.ShapeDtypeStruct((b_pad, A), jnp.float32),
        grid=grid,
        in_specs=[
            pl.BlockSpec((tb, obs_size), batched),     # obs
            pl.BlockSpec((tb, A), batched),            # mask
            pl.BlockSpec((obs_size, hid), resident),   # w1
            pl.BlockSpec((1, hid), resident),          # b1
            pl.BlockSpec((hid, hid), resident),        # w2
            pl.BlockSpec((1, hid), resident),          # b2
            pl.BlockSpec((hid, A), resident),          # w3
            pl.BlockSpec((1, A), resident),            # b3
        ],
        out_specs=pl.BlockSpec((tb, A), batched),
        compiler_params=pltpu.CompilerParams(
            dimension_semantics=("parallel",),         # v7x: shard across 2 TCs
            vmem_limit_bytes=64 * 1024 * 1024,
        ),
        cost_estimate=pl.CostEstimate(
            flops=flops, transcendentals=0, bytes_accessed=bytes_accessed),
    )(obs, mask,
      params["w1"], params["b1"], params["w2"], params["b2"],
      params["w3"], params["b3"])

    return out[:B] if b_pad != B else out


def init_params(key, obs_size=10, hidden_dim=64, action_dim=5):
    """Xavier-uniform weights (stored transposed [in, out]), zero biases."""
    def xavier(key, fan_in, fan_out):
        bound = (6.0 / (fan_in + fan_out)) ** 0.5
        # PyTorch weight is [out, in]; we store the transpose [in, out].
        return jax.random.uniform(key, (fan_in, fan_out), jnp.float32, -bound, bound)

    k1, k2, k3 = jax.random.split(key, 3)
    return {
        "w1": xavier(k1, obs_size, hidden_dim),
        "b1": jnp.zeros((1, hidden_dim), jnp.float32),
        "w2": xavier(k2, hidden_dim, hidden_dim),
        "b2": jnp.zeros((1, hidden_dim), jnp.float32),
        "w3": xavier(k3, hidden_dim, action_dim),
        "b3": jnp.zeros((1, action_dim), jnp.float32),
    }


def value_function(batch=1):
    # TODO(synk): module always returns a zero scalar value estimate; no kernel needed.
    return jnp.zeros((1,), jnp.float32)


def _reference(obs, mask, params):
    h1 = jnp.maximum(obs @ params["w1"] + params["b1"], 0.0)
    h2 = jnp.maximum(h1 @ params["w2"] + params["b2"], 0.0)
    logits = h2 @ params["w3"] + params["b3"]
    zero_rows = jnp.sum(mask, axis=1) < 1e-8
    ref_mask = mask.at[:, 0].set(jnp.where(zero_rows, 1.0, mask[:, 0]))
    return logits + (1.0 - ref_mask) * (-1e20)


if __name__ == "__main__":
    key = jax.random.PRNGKey(0)
    k_params, k_obs, k_obs2, k_mask2 = jax.random.split(key, 4)

    B, OBS, HID, A = 2, 10, 64, 5
    params = init_params(k_params, obs_size=OBS, hidden_dim=HID, action_dim=A)

    obs = jax.random.normal(k_obs, (B, OBS), jnp.float32)
    # second row is an all-zero mask to exercise the "force action 0 valid" path
    mask = jnp.array([[1.0, 0.0, 1.0, 0.0, 1.0],
                      [0.0, 0.0, 0.0, 0.0, 0.0]], jnp.float32)

    masked_logits = action_mask_forward(obs, mask, params)
    jax.block_until_ready(masked_logits)
    assert masked_logits.shape == (B, A)
    ref = _reference(obs, mask, params)
    assert jnp.allclose(masked_logits, ref, rtol=1e-4, atol=1e-4), \
        "mismatch vs f32 reference (small batch)"

    # Larger, non-divisible batch exercises the tiled + batch-padded path.
    B2 = 1000
    obs2 = jax.random.normal(k_obs2, (B2, OBS), jnp.float32)
    mask2 = (jax.random.uniform(k_mask2, (B2, A)) > 0.5).astype(jnp.float32)
    out2 = action_mask_forward(obs2, mask2, params, block_b=256)
    jax.block_until_ready(out2)
    assert out2.shape == (B2, A)
    ref2 = _reference(obs2, mask2, params)
    assert jnp.allclose(out2, ref2, rtol=1e-4, atol=1e-4), \
        "mismatch vs f32 reference (tiled batch)"

    _ = value_function()
    print("KERNEL_OK")
</pallas_src>

<mosaic_0001>
module attributes {stable_mosaic.version = 11 : i64} {
  func.func @_action_mask_kernel(%arg0: i32, %arg1: memref<2x10xf32, #tpu.memory_space<vmem>>, %arg2: memref<2x5xf32, #tpu.memory_space<vmem>>, %arg3: memref<10x64xf32, #tpu.memory_space<vmem>>, %arg4: memref<1x64xf32, #tpu.memory_space<vmem>>, %arg5: memref<64x64xf32, #tpu.memory_space<vmem>>, %arg6: memref<1x64xf32, #tpu.memory_space<vmem>>, %arg7: memref<64x5xf32, #tpu.memory_space<vmem>>, %arg8: memref<1x5xf32, #tpu.memory_space<vmem>>, %arg9: memref<2x5xf32, #tpu.memory_space<vmem>>) attributes {dimension_semantics = [#tpu.dimension_semantics<parallel>], iteration_bounds = array<i64: 1>, scalar_prefetch = 0 : i64, scratch_operands = 0 : i64, tpu.core_type = #tpu.core_type<tc>, window_params = [{transform_indices = @transform_0, window_bounds = array<i64: 2, 10>}, {transform_indices = @transform_1, window_bounds = array<i64: 2, 5>}, {pipeline_mode = #tpu.pipeline_mode<synchronous>, transform_indices = @transform_2, window_bounds = array<i64: 10, 64>}, {pipeline_mode = #tpu.pipeline_mode<synchronous>, transform_indices = @transform_3, window_bounds = array<i64: 1, 64>}, {pipeline_mode = #tpu.pipeline_mode<synchronous>, transform_indices = @transform_4, window_bounds = array<i64: 64, 64>}, {pipeline_mode = #tpu.pipeline_mode<synchronous>, transform_indices = @transform_5, window_bounds = array<i64: 1, 64>}, {pipeline_mode = #tpu.pipeline_mode<synchronous>, transform_indices = @transform_6, window_bounds = array<i64: 64, 5>}, {pipeline_mode = #tpu.pipeline_mode<synchronous>, transform_indices = @transform_7, window_bounds = array<i64: 1, 5>}, {transform_indices = @transform_8, window_bounds = array<i64: 2, 5>}]} {
    %c0 = arith.constant 0 : index
    %c0_0 = arith.constant 0 : index
    %0 = vector.load %arg1[%c0, %c0_0] : memref<2x10xf32, #tpu.memory_space<vmem>>, vector<2x10xf32>
    %c0_1 = arith.constant 0 : index
    %c0_2 = arith.constant 0 : index
    %1 = vector.load %arg3[%c0_1, %c0_2] : memref<10x64xf32, #tpu.memory_space<vmem>>, vector<10x64xf32>
    %cst = arith.constant dense<0.000000e+00> : vector<2x64xf32>
    %2 = tpu.matmul %0, %1, %cst {dimension_numbers = #tpu.dot_dimension_numbers<[1], [0], [0], [1], [0, 0, 1, 1], [], []>} : vector<2x10xf32>, vector<10x64xf32>, vector<2x64xf32> -> vector<2x64xf32>
    %c0_3 = arith.constant 0 : index
    %c0_4 = arith.constant 0 : index
    %3 = vector.load %arg4[%c0_3, %c0_4] : memref<1x64xf32, #tpu.memory_space<vmem>>, vector<1x64xf32>
    %4 = vector.broadcast %3 : vector<1x64xf32> to vector<2x64xf32>
    %5 = arith.addf %2, %4 : vector<2x64xf32>
    %cst_5 = arith.constant 0.000000e+00 : f32
    %6 = vector.broadcast %cst_5 : f32 to vector<2x64xf32>
    %7 = arith.maximumf %5, %6 : vector<2x64xf32>
    %c0_6 = arith.constant 0 : index
    %c0_7 = arith.constant 0 : index
    %8 = vector.load %arg5[%c0_6, %c0_7] : memref<64x64xf32, #tpu.memory_space<vmem>>, vector<64x64xf32>
    %cst_8 = arith.constant dense<0.000000e+00> : vector<2x64xf32>
    %9 = tpu.matmul %7, %8, %cst_8 {dimension_numbers = #tpu.dot_dimension_numbers<[1], [0], [0], [1], [0, 0, 1, 1], [], []>} : vector<2x64xf32>, vector<64x64xf32>, vector<2x64xf32> -> vector<2x64xf32>
    %c0_9 = arith.constant 0 : index
    %c0_10 = arith.constant 0 : index
    %10 = vector.load %arg6[%c0_9, %c0_10] : memref<1x64xf32, #tpu.memory_space<vmem>>, vector<1x64xf32>
    %11 = vector.broadcast %10 : vector<1x64xf32> to vector<2x64xf32>
    %12 = arith.addf %9, %11 : vector<2x64xf32>
    %cst_11 = arith.constant 0.000000e+00 : f32
    %13 = vector.broadcast %cst_11 : f32 to vector<2x64xf32>
    %14 = arith.maximumf %12, %13 : vector<2x64xf32>
    %c0_12 = arith.constant 0 : index
    %c0_13 = arith.constant 0 : index
    %15 = vector.load %arg7[%c0_12, %c0_13] : memref<64x5xf32, #tpu.memory_space<vmem>>, vector<64x5xf32>
    %cst_14 = arith.constant dense<0.000000e+00> : vector<2x5xf32>
    %16 = tpu.matmul %14, %15, %cst_14 {dimension_numbers = #tpu.dot_dimension_numbers<[1], [0], [0], [1], [0, 0, 1, 1], [], []>} : vector<2x64xf32>, vector<64x5xf32>, vector<2x5xf32> -> vector<2x5xf32>
    %c0_15 = arith.constant 0 : index
    %c0_16 = arith.constant 0 : index
    %17 = vector.load %arg8[%c0_15, %c0_16] : memref<1x5xf32, #tpu.memory_space<vmem>>, vector<1x5xf32>
    %18 = vector.broadcast %17 : vector<1x5xf32> to vector<2x5xf32>
    %19 = arith.addf %16, %18 : vector<2x5xf32>
    %c0_17 = arith.constant 0 : index
    %c0_18 = arith.constant 0 : index
    %20 = vector.load %arg2[%c0_17, %c0_18] : memref<2x5xf32, #tpu.memory_space<vmem>>, vector<2x5xf32>
    %cst_19 = arith.constant dense<0.000000e+00> : vector<2xf32>
    %21 = vector.multi_reduction <add>, %20, %cst_19 [1] : vector<2x5xf32> to vector<2xf32>
    %22 = vector.shape_cast %21 : vector<2xf32> to vector<2x1xf32>
    %cst_20 = arith.constant 9.99999993E-9 : f32
    %23 = vector.broadcast %cst_20 : f32 to vector<2x1xf32>
    %24 = arith.cmpf olt, %22, %23 : vector<2x1xf32>
    %25 = tpu.iota {dimensions = array<i32: 1>} : vector<2x5xi32>
    %c0_i32 = arith.constant 0 : i32
    %26 = vector.broadcast %c0_i32 : i32 to vector<2x5xi32>
    %27 = arith.cmpi eq, %25, %26 : vector<2x5xi32>
    %28 = vector.broadcast %24 : vector<2x1xi1> to vector<2x5xi1>
    %29 = arith.andi %28, %27 : vector<2x5xi1>
    %cst_21 = arith.constant 1.000000e+00 : f32
    %30 = vector.broadcast %cst_21 : f32 to vector<2x5xf32>
    %31 = arith.select %29, %30, %20 : vector<2x5xi1>, vector<2x5xf32>
    %cst_22 = arith.constant 1.000000e+00 : f32
    %32 = vector.broadcast %cst_22 : f32 to vector<2x5xf32>
    %33 = arith.subf %32, %31 : vector<2x5xf32>
    %cst_23 = arith.constant -1.000000e+20 : f32
    %34 = vector.broadcast %cst_23 : f32 to vector<2x5xf32>
    %35 = arith.mulf %33, %34 : vector<2x5xf32>
    %36 = arith.addf %19, %35 : vector<2x5xf32>
    %c0_24 = arith.constant 0 : index
    %c0_25 = arith.constant 0 : index
    %37 = vector.load %arg9[%c0_24, %c0_25] : memref<2x5xf32, #tpu.memory_space<vmem>>, vector<2x5xf32>
    tpu.vector_store %arg9[%c0_24, %c0_25], %36 {strides = array<i32>} : memref<2x5xf32, #tpu.memory_space<vmem>>, vector<2x5xf32>,
    return
  }
  func.func @transform_0(%arg0: i32) -> (i32, i32) {
    %c0_i32 = arith.constant 0 : i32
    %c0_i32_0 = arith.constant 0 : i32
    return %arg0, %c0_i32 : i32, i32
  }
  func.func @transform_1(%arg0: i32) -> (i32, i32) {
    %c0_i32 = arith.constant 0 : i32
    %c0_i32_0 = arith.constant 0 : i32
    return %arg0, %c0_i32 : i32, i32
  }
  func.func @transform_2(%arg0: i32) -> (i32, i32) {
    %c0_i32 = arith.constant 0 : i32
    %c0_i32_0 = arith.constant 0 : i32
    %c0_i32_1 = arith.constant 0 : i32
    return %c0_i32, %c0_i32_0 : i32, i32
  }
  func.func @transform_3(%arg0: i32) -> (i32, i32) {
    %c0_i32 = arith.constant 0 : i32
    %c0_i32_0 = arith.constant 0 : i32
    %c0_i32_1 = arith.constant 0 : i32
    return %c0_i32, %c0_i32_0 : i32, i32
  }
  func.func @transform_4(%arg0: i32) -> (i32, i32) {
    %c0_i32 = arith.constant 0 : i32
    %c0_i32_0 = arith.constant 0 : i32
    %c0_i32_1 = arith.constant 0 : i32
    return %c0_i32, %c0_i32_0 : i32, i32
  }
  func.func @transform_5(%arg0: i32) -> (i32, i32) {
    %c0_i32 = arith.constant 0 : i32
    %c0_i32_0 = arith.constant 0 : i32
    %c0_i32_1 = arith.constant 0 : i32
    return %c0_i32, %c0_i32_0 : i32, i32
  }
  func.func @transform_6(%arg0: i32) -> (i32, i32) {
    %c0_i32 = arith.constant 0 : i32
    %c0_i32_0 = arith.constant 0 : i32
    %c0_i32_1 = arith.constant 0 : i32
    return %c0_i32, %c0_i32_0 : i32, i32
  }
  func.func @transform_7(%arg0: i32) -> (i32, i32) {
    %c0_i32 = arith.constant 0 : i32
    %c0_i32_0 = arith.constant 0 : i32
    %c0_i32_1 = arith.constant 0 : i32
    return %c0_i32, %c0_i32_0 : i32, i32
  }
  func.func @transform_8(%arg0: i32) -> (i32, i32) {
    %c0_i32 = arith.constant 0 : i32
    %c0_i32_0 = arith.constant 0 : i32
    return %arg0, %c0_i32 : i32, i32
  }
}

</mosaic_0001>

<llo_original>
// kernel: tpu_custom_call.1
$region0: #{tpu_custom_call.1}
  #allocation0 [shape = 'u32[]', space=smem, size = 0x4, offset = 0x4, fixed_abs, tag = 'smem constant byte address 0x4 - core index']
  #allocation1 [shape = 'u32[72,128]{1,0:T(1,128)}', space=vmem, size = 0x9000, scoped, tag = 'internal scratch']
  %s0 = inlined_call_operand.vmem [shape: f32[2,10], index: 0, kind: input, shape index: {}]
  %s1 = inlined_call_operand.vmem [shape: f32[2,5], index: 1, kind: input, shape index: {}]
  %s2 = inlined_call_operand.hbm [shape: f32[10,64], index: 2, kind: input, shape index: {}]
  %s3 = inlined_call_operand.vmem [shape: f32[1,64], index: 3, kind: input, shape index: {}]
  %s4 = inlined_call_operand.vmem [shape: f32[64,64], index: 4, kind: input, shape index: {}]
  %s5 = inlined_call_operand.vmem [shape: f32[1,64], index: 5, kind: input, shape index: {}]
  %s6 = inlined_call_operand.vmem [shape: f32[64,5], index: 6, kind: input, shape index: {}]
  %s7 = inlined_call_operand.vmem [shape: f32[1,5], index: 7, kind: input, shape index: {}]
  %s8 = inlined_call_operand.hbm [shape: f32[2,5], index: 8, kind: output, shape index: {}]
  %s9 = sld [smem:[#allocation0]]
  $region46: #{tpu_custom_call.1} parent=0
    _
  %s11 = ssub.s32 1, %s9
  %s12 = scalar_select 0, %s11, %s9
  $region1: #{tpu_custom_call.1} parent=0
    #allocation2 [shape = 'u8[8192]{0}', space=vmem, size = 0x2000, scoped, tag = 'input window, operand 2, single buffered']
    #allocation3 [shape = 's32[1]{0}', space=sflag, size = 0x4, scoped, tag = 'scoped memory for tpu_custom_call.1']
    #allocation4 [shape = 's32[1]{0}', space=sflag, size = 0x4, scoped, tag = 'scoped memory for tpu_custom_call.1']
    #allocation5 [shape = 'u8[1024]{0}', space=vmem, size = 0x400, scoped, tag = 'output window, operand 0, single buffered']
    %13 = vsyncpa [#allocation3], 0
    %14 = vsyncpa [#allocation4], 0
    // Predicated region
    $region2: #{tpu_custom_call.1} parent=1 // pred_check
      _
    $region3: #{tpu_custom_call.1} parent=1 // pred_check_branch
      %16 = sbr.rel (0) target = $region5
    $region4: #{tpu_custom_call.1} parent=1 // pred_region
      _
    $region5: #{tpu_custom_call.1} parent=1 // pred_fallthru
      _
    // Predicated region
    $region6: #{tpu_custom_call.1} parent=1 // pred_check
      _
    $region7: #{tpu_custom_call.1} parent=1 // pred_check_branch
      %18 = sbr.rel (0) target = $region9
    $region8: #{tpu_custom_call.1} parent=1 // pred_region
      _
    $region9: #{tpu_custom_call.1} parent=1 // pred_fallthru
      _
    // Predicated region
    $region10: #{tpu_custom_call.1} parent=1 // pred_check
      _
    $region11: #{tpu_custom_call.1} parent=1 // pred_check_branch
      %20 = sbr.rel (0) target = $region13
    $region12: #{tpu_custom_call.1} parent=1 // pred_region
      %22 = vsyncadd [#allocation3], 0
      %s23 = sshll.u32 %s2, 4
      %s24 = int_to_ptr.hbm [resolvable:$true] %s23
      %s25 = sshll.u32 [#allocation2], 4
      %s26 = int_to_ptr.vmem [resolvable:$true] %s25
      %31 = dma.hbm_to_vmem [thread:$0]  %s24, 256, %s26, [#allocation3], 128, 128, 8
    $region13: #{tpu_custom_call.1} parent=1 // pred_fallthru
      _
    // Predicated region
    $region14: #{tpu_custom_call.1} parent=1 // pred_check
      _
    $region15: #{tpu_custom_call.1} parent=1 // pred_check_branch
      %33 = sbr.rel (0) target = $region17
    $region16: #{tpu_custom_call.1} parent=1 // pred_region
      _
    $region17: #{tpu_custom_call.1} parent=1 // pred_fallthru
      _
    // Predicated region
    $region18: #{tpu_custom_call.1} parent=1 // pred_check
      _
    $region19: #{tpu_custom_call.1} parent=1 // pred_check_branch
      %35 = sbr.rel (0) target = $region21
    $region20: #{tpu_custom_call.1} parent=1 // pred_region
      _
    $region21: #{tpu_custom_call.1} parent=1 // pred_fallthru
      _
    // Predicated region
    $region22: #{tpu_custom_call.1} parent=1 // pred_check
      _
    $region23: #{tpu_custom_call.1} parent=1 // pred_check_branch
      %37 = sbr.rel (0) target = $region25
    $region24: #{tpu_custom_call.1} parent=1 // pred_region
      _
    $region25: #{tpu_custom_call.1} parent=1 // pred_fallthru
      _
    // Predicated region
    $region26: #{tpu_custom_call.1} parent=1 // pred_check
      _
    $region27: #{tpu_custom_call.1} parent=1 // pred_check_branch
      %39 = sbr.rel (0) target = $region29
    $region28: #{tpu_custom_call.1} parent=1 // pred_region
      _
    $region29: #{tpu_custom_call.1} parent=1 // pred_fallthru
      _
    // Predicated region
    $region30: #{tpu_custom_call.1} parent=1 // pred_check
      _
    $region31: #{tpu_custom_call.1} parent=1 // pred_check_branch
      %41 = sbr.rel (0) target = $region33
    $region32: #{tpu_custom_call.1} parent=1 // pred_region
      _
    $region33: #{tpu_custom_call.1} parent=1 // pred_fallthru
      _
    // Predicated region
    $region34: #{tpu_custom_call.1} parent=1 // pred_check
      _
    $region35: #{tpu_custom_call.1} parent=1 // pred_check_branch
      %43 = sbr.rel (0) target = $region37
    $region36: #{tpu_custom_call.1} parent=1 // pred_region
      %45 = dma.done [#allocation3], 256
    $region37: #{tpu_custom_call.1} parent=1 // pred_fallthru
      _
    %v46 = vld [vmem:[%s0] sm:$0x3]
    %v47 = vld [vmem:[#allocation2] sm:$0xff]
    %v48 = vld [vmem:[#allocation2 + $0x8] sm:$0x3]
    %v49 = vld [vmem:[%s3] sm:$0x1]
    %v51 = vperm.slane %v49, 0
    %vm53 = vcmask 80896
    %v55 = vsel %vm53, %v46, 0
    %vm57 = vcmask 1041408
    %v59 = vsel %vm57, %v48, 0
    %61 = vmatpush.msra.mxu0 0.0
    %62 = vmatpush.msra.mxu0 0.0
    %63 = vmatpush.msra.mxu0 0.0
    %64 = vmatpush.msra.mxu0 0.0
    %65 = vmatpush.msra.mxu0 0.0
    %66 = vmatpush.msra.mxu0 0.0
    %67 = vmatpush.msra.mxu0 0.0
    %68 = vmatpush.msra.mxu0 0.0
    %69 = vmatpush.msra.mxu0 0.0
    %70 = vmatpush.msra.mxu0 0.0
    %71 = vmatpush.msra.mxu0 0.0
    %72 = vmatpush.msra.mxu0 0.0
    %73 = vmatpush.msra.mxu0 0.0
    %74 = vmatpush.msra.mxu0 0.0
    %75 = vmatpush.msra.mxu0 %v59
    %76 = vmatpush.msra.mxu0 %v47
    %77 = vmatmul.f32.gmra.mxu0 %v55
    %v78 = vpop.f32.mrf.mxu0
    %v79 = vadd.f32 %v51, %v78
    %80 = vdwg.mxu0
    %v81 = vmax.f32 %v79, 0.0
    %v82 = vld [vmem:[%s4] sm:$0xff]
    %v83 = vld [vmem:[%s4 + $0x8] sm:$0xff]
    %v84 = vld [vmem:[%s4 + $0x10] sm:$0xff]
    %v85 = vld [vmem:[%s4 + $0x18] sm:$0xff]
    %v86 = vld [vmem:[%s4 + $0x20] sm:$0xff]
    %v87 = vld [vmem:[%s4 + $0x28] sm:$0xff]
    %v88 = vld [vmem:[%s4 + $0x30] sm:$0xff]
    %v89 = vld [vmem:[%s4 + $0x38] sm:$0xff]
    %v90 = vld [vmem:[%s5] sm:$0x1]
    %v92 = vperm.slane %v90, 0
    %vm94 = vcmask 523264
    %v96 = vsel %vm94, %v81, 0
    %98 = vmatpush.msra.mxu0 0.0
    %99 = vmatpush.msra.mxu0 0.0
    %100 = vmatpush.msra.mxu0 0.0
    %101 = vmatpush.msra.mxu0 0.0
    %102 = vmatpush.msra.mxu0 0.0
    %103 = vmatpush.msra.mxu0 0.0
    %104 = vmatpush.msra.mxu0 0.0
    %105 = vmatpush.msra.mxu0 0.0
    %106 = vmatpush.msra.mxu0 %v89
    %107 = vmatpush.msra.mxu0 %v88
    %108 = vmatpush.msra.mxu0 %v87
    %109 = vmatpush.msra.mxu0 %v86
    %110 = vmatpush.msra.mxu0 %v85
    %111 = vmatpush.msra.mxu0 %v84
    %112 = vmatpush.msra.mxu0 %v83
    %113 = vmatpush.msra.mxu0 %v82
    %114 = vmatmul.f32.gmra.mxu0 %v96
    %v115 = vpop.f32.mrf.mxu0
    %v116 = vadd.f32 %v92, %v115
    %117 = vdwg.mxu0
    %v118 = vmax.f32 %v116, 0.0
    %v119 = vld [vmem:[%s6] sm:$0xff]
    %v120 = vld [vmem:[%s6 + $0x8] sm:$0xff]
    %v121 = vld [vmem:[%s6 + $0x10] sm:$0xff]
    %v122 = vld [vmem:[%s6 + $0x18] sm:$0xff]
    %v123 = vld [vmem:[%s6 + $0x20] sm:$0xff]
    %v124 = vld [vmem:[%s6 + $0x28] sm:$0xff]
    %v125 = vld [vmem:[%s6 + $0x30] sm:$0xff]
    %v126 = vld [vmem:[%s6 + $0x38] sm:$0xff]
    %v127 = vld [vmem:[%s7] sm:$0x1]
    %v129 = vperm.slane %v127, 0
    %v132 = vsel %vm94, %v118, 0
    %134 = vmatpush.msra.mxu0 0.0
    %135 = vmatpush.msra.mxu0 0.0
    %136 = vmatpush.msra.mxu0 0.0
    %137 = vmatpush.msra.mxu0 0.0
    %138 = vmatpush.msra.mxu0 0.0
    %139 = vmatpush.msra.mxu0 0.0
    %140 = vmatpush.msra.mxu0 0.0
    %141 = vmatpush.msra.mxu0 0.0
    %142 = vmatpush.msra.mxu0 %v126
    %143 = vmatpush.msra.mxu0 %v125
    %144 = vmatpush.msra.mxu0 %v124
    %145 = vmatpush.msra.mxu0 %v123
    %146 = vmatpush.msra.mxu0 %v122
    %147 = vmatpush.msra.mxu0 %v121
    %148 = vmatpush.msra.mxu0 %v120
    %149 = vmatpush.msra.mxu0 %v119
    %150 = vmatmul.f32.gmra.mxu0 %v132
    %v151 = vpop.f32.mrf.mxu0
    %v152 = vadd.f32 %v129, %v151
    %153 = vdwg.mxu0
    %v154 = vld [vmem:[%s1] sm:$0x3]
    %vm155 = vcmask 33792
    %v156 = vsel %vm155, %v154, 0.0
    %157 = vadd.xlane.f32.xlu0 %v156
    %v158 = vpop.xlane.xlu0 %157
    %vm159 = vcmp.lt.f32.partialorder %v158, 1e-08
    %v160 = vlaneseq
    %v161 = vand.u32 %v160, 127
    %vm162 = vcmp.eq.s32.totalorder %v161, 0
    %v163 = vsel %vm159, 1, 0
    %vm164 = vcmp.eq.s32.totalorder %v163, 1
    %vm165 = vmand %vm164, %vm162
    %v166 = vsel %vm165, 1.0, %v154
    %v167 = vsub.f32 1.0, %v166
    %v168 = vmul.f32 %v167, -1e+20
    %v169 = vadd.f32 %v152, %v168
    %170 = vst.msk [vmem:[#allocation5] sm:$0x3] %vm155, %v169
    // Predicated region
    $region38: #{tpu_custom_call.1} parent=1 // pred_check
      _
    $region39: #{tpu_custom_call.1} parent=1 // pred_check_branch
      %172 = sbr.rel (0) target = $region41
    $region40: #{tpu_custom_call.1} parent=1 // pred_region
      %174 = vsyncadd [#allocation4], 0
      %s176 = sshll.u32 [#allocation5], 4
      %s177 = int_to_ptr.vmem [resolvable:$true] %s176
      %s178 = sshll.u32 %s8, 4
      %s179 = int_to_ptr.hbm [resolvable:$true] %s178
      %181 = dma.vmem_to_hbm [thread:$0]  %s177, 32, %s179, [#allocation4]
    $region41: #{tpu_custom_call.1} parent=1 // pred_fallthru
      _
    // Predicated region
    $region42: #{tpu_custom_call.1} parent=1 // pred_check
      _
    $region43: #{tpu_custom_call.1} parent=1 // pred_check_branch
      %183 = sbr.rel (0) target = $region45
    $region44: #{tpu_custom_call.1} parent=1 // pred_region
      %185 = dma.done [#allocation4], 32
    $region45: #{tpu_custom_call.1} parent=1 // pred_fallthru
      _
    %186 = vsyncpa [#allocation3], 1
    %187 = vsyncpa [#allocation4], 1

</llo_original>
